<compile_context>
chip_gen: v5e
topology: v5e:2x2
jax: 0.10.0
libtpu: 0.0.40
codegen_flags: <defaults>
</compile_context>

<pallas_src>
import functools
import math

import jax
import jax.numpy as jnp
from jax.experimental import pallas as pl
from jax.experimental.pallas import tpu as pltpu

_LANES = 128
_ROW_TILE_CAP = 1024                    # 1024 rows x 128 lanes per tile (review sweet spot)
_PER_BUFFER_BYTES = 3 * 1024 * 1024     # 2 inputs x 2 pipeline buffers ~<= 12 MiB total
_VMEM_LIMIT_BYTES = 32 * 1024 * 1024    # safe on v5e / v6e / v7x


def _dsm_abs_sum_kernel(pred_ref, noise_ref, out_ref, *,
                        rows_total, tile_rows, tiles_per_chunk, need_mask):
    """grid = (NC, NT): NC parallel row-chunks x NT reduction tiles.

    pred_ref / noise_ref : VMEM (B, TR, 128) in the native input dtype
    out_ref              : VMEM (B, 128) f32 running lane sums for this chunk
                           (the output block doubles as the accumulator).
    """
    # program_id only at the kernel top level (never inside pl.when bodies).
    c = pl.program_id(0)
    t = pl.program_id(1)

    @pl.when(t == 0)
    def _init():
        out_ref[...] = jnp.zeros_like(out_ref)

    # Upcast in-vreg; HBM traffic stays in the native (possibly bf16) dtype.
    d = jnp.abs(pred_ref[...].astype(jnp.float32) +
                noise_ref[...].astype(jnp.float32))              # (B, TR, 128)

    if need_mask:
        # Mask rows past the true row count (ragged last tile / duplicated
        # clamped tiles contribute exactly zero).
        row0 = (c * tiles_per_chunk + t) * tile_rows
        gr = row0 + jax.lax.broadcasted_iota(jnp.int32, d.shape, 1)
        d = jnp.where(gr < rows_total, d, 0.0)

    out_ref[...] += jnp.sum(d, axis=1)                           # (B, 128)


def _dsm_key_abs_sum(pred, noise):
    """sum over features of |pred + noise| per batch element -> (B,) float32."""
    assert pred.shape == noise.shape, (pred.shape, noise.shape)
    b = pred.shape[0]
    f = math.prod(pred.shape[1:])

    def pack(x):
        flat = x.reshape(b, f)                    # free row-major reshape, no copy
        pad = (-f) % _LANES
        if pad:                                   # only when F is not a multiple of 128
            flat = jnp.pad(flat, ((0, 0), (0, pad)))
        return flat.reshape(b, -1, _LANES)        # (B, R, 128), still native dtype

    pred3 = pack(pred)
    noise3 = pack(noise)
    r = pred3.shape[1]

    # Row-tile size: as large as the per-buffer VMEM budget allows (mem-bound kernel).
    itemsize = max(pred.dtype.itemsize, noise.dtype.itemsize)
    tr_cap = max(8, (_PER_BUFFER_BYTES // (b * _LANES * itemsize)) // 8 * 8)
    tr = min(_ROW_TILE_CAP, tr_cap)
    if r <= tr:
        tr = r                                    # single full-extent tile
    nt_total = pl.cdiv(r, tr)

    # Parallel row-chunk axis so v7x's two TensorCores can split one big key.
    nc = 2 if nt_total >= 4 else 1
    nt = pl.cdiv(nt_total, nc)
    need_mask = (nc * nt * tr) != r

    def in_map(c, t):
        blk = c * nt + t
        if need_mask:
            blk = jnp.minimum(blk, nt_total - 1)  # duplicated reads are fully masked
        return (0, blk, 0)

    out = pl.pallas_call(
        functools.partial(_dsm_abs_sum_kernel,
                          rows_total=r, tile_rows=tr,
                          tiles_per_chunk=nt, need_mask=need_mask),
        out_shape=jax.ShapeDtypeStruct((nc, b, _LANES), jnp.float32),
        grid=(nc, nt),
        in_specs=[
            pl.BlockSpec((b, tr, _LANES), in_map),
            pl.BlockSpec((b, tr, _LANES), in_map),
        ],
        out_specs=pl.BlockSpec((None, b, _LANES), lambda c, t: (c, 0, 0)),
        compiler_params=pltpu.CompilerParams(
            dimension_semantics=("parallel", "arbitrary"),
            vmem_limit_bytes=_VMEM_LIMIT_BYTES,
        ),
    )(pred3, noise3)

    return jnp.sum(out, axis=(0, 2))              # (B,)


def _dsm_loss_core(preds, noises, stds):
    """Returns (sum_loss scalar, per-key means (K,)).  Jittable."""
    inv_std = (1.0 / stds.astype(jnp.float32)).reshape(-1)       # matches torch.reciprocal
    key_means = []
    weighted = []
    for p, n in zip(preds, noises):
        f = math.prod(p.shape[1:])
        per_sample = _dsm_key_abs_sum(p, n) * (1.0 / f)          # (B,)
        key_means.append(jnp.mean(per_sample))
        weighted.append(jnp.mean(per_sample * inv_std))
    sum_loss = functools.reduce(lambda a, b: a + b, weighted)
    return sum_loss, jnp.stack(key_means)


_dsm_loss_core_jit = jax.jit(_dsm_loss_core)


def dsm_loss(pred_dict, scaled_noise_dict, stds, mode="train"):
    """Mirror of DSM_Loss.forward: returns (sum_loss, loss_dict).

    Each key's reduction is one Pallas kernel reading the original tensor in its
    native dtype; loss_dict is built from ONE deferred device->host transfer.
    """
    keys = list(pred_dict.keys())
    assert set(keys) == set(scaled_noise_dict.keys()), "pred/noise dicts must share keys"
    for k in keys:
        assert pred_dict[k].shape == scaled_noise_dict[k].shape, \
            (k, pred_dict[k].shape, scaled_noise_dict[k].shape)

    preds = tuple(pred_dict[k] for k in keys)
    noises = tuple(scaled_noise_dict[k] for k in keys)

    # TODO(synk): forward-only; add jax.custom_vjp (bwd = sign(pred+noise)*w/(F*B))
    # if gradients through sum_loss are needed for training.
    sum_loss, key_means = _dsm_loss_core_jit(preds, noises, stds)

    key_means_h, sum_loss_h = jax.device_get((key_means, sum_loss))
    loss_dict = {f"{mode}/{k}": float(key_means_h[i]) for i, k in enumerate(keys)}
    loss_dict[f"{mode}/loss"] = float(sum_loss_h)
    return sum_loss, loss_dict


def _dsm_loss_ref(pred_dict, scaled_noise_dict, stds, mode="train"):
    """Pure-JAX reference for validation."""
    sum_loss = jnp.float32(0.0)
    loss_dict = {}
    for key in pred_dict.keys():
        loss = jnp.abs(pred_dict[key].astype(jnp.float32)
                       - (-scaled_noise_dict[key].astype(jnp.float32)))
        loss = jnp.mean(loss.reshape(loss.shape[0], -1), axis=1)
        loss_dict[f"{mode}/{key}"] = float(jnp.mean(loss))
        sum_loss = sum_loss + jnp.mean(loss * (1.0 / stds))
    loss_dict[f"{mode}/loss"] = float(sum_loss)
    return sum_loss, loss_dict


if __name__ == "__main__":
    key = jax.random.PRNGKey(0)
    k1, k2, k3, k4, k5 = jax.random.split(key, 5)

    B = 2
    # Two representative prediction streams (e.g. trajectory + motion features).
    pred_dict = {
        "traj": jax.random.normal(k1, (B, 4, 16, 16), dtype=jnp.float32),
        "motion": jax.random.normal(k2, (B, 8, 32), dtype=jnp.float32),
    }
    scaled_noise_dict = {
        "traj": jax.random.normal(k3, (B, 4, 16, 16), dtype=jnp.float32),
        "motion": jax.random.normal(k4, (B, 8, 32), dtype=jnp.float32),
    }
    # stds: one positive scale per batch element.
    stds = jax.random.uniform(k5, (B,), dtype=jnp.float32, minval=0.5, maxval=2.0)

    sum_loss, loss_dict = dsm_loss(pred_dict, scaled_noise_dict, stds, mode="train")
    jax.block_until_ready(sum_loss)

    ref_sum, ref_dict = _dsm_loss_ref(pred_dict, scaled_noise_dict, stds, mode="train")
    assert abs(float(sum_loss) - float(ref_sum)) < 1e-4, (float(sum_loss), float(ref_sum))
    for k in ref_dict:
        assert abs(loss_dict[k] - ref_dict[k]) < 1e-4, (k, loss_dict[k], ref_dict[k])

    print("KERNEL_OK")
</pallas_src>

<mosaic_0001>
module attributes {stable_mosaic.version = 11 : i64} {
  func.func @_dsm_abs_sum_kernel(%arg0: i32, %arg1: i32, %arg2: memref<2x8x128xf32, #tpu.memory_space<vmem>>, %arg3: memref<2x8x128xf32, #tpu.memory_space<vmem>>, %arg4: memref<1x2x128xf32, #tpu.memory_space<vmem>>) attributes {dimension_semantics = [#tpu.dimension_semantics<parallel>, #tpu.dimension_semantics<arbitrary>], iteration_bounds = array<i64: 1, 1>, scalar_prefetch = 0 : i64, scratch_operands = 0 : i64, tpu.core_type = #tpu.core_type<tc>, window_params = [{transform_indices = @transform_0, window_bounds = array<i64: 2, 8, 128>}, {transform_indices = @transform_1, window_bounds = array<i64: 2, 8, 128>}, {transform_indices = @transform_2, window_bounds = array<i64: 1, 2, 128>}]} {
    %c0_i32 = arith.constant 0 : i32
    %0 = arith.cmpi eq, %arg1, %c0_i32 : i32
    %1 = arith.extui %0 : i1 to i32
    %c0_i32_0 = arith.constant 0 : i32
    %2 = arith.cmpi ne, %1, %c0_i32_0 : i32
    scf.if %2 {
      %cst_12 = arith.constant 0.000000e+00 : f32
      %14 = vector.broadcast %cst_12 : f32 to vector<2x128xf32>
      %c0_13 = arith.constant 0 : index
      %c0_14 = arith.constant 0 : index
      %c0_15 = arith.constant 0 : index
      %15 = vector.load %arg4[%c0_13, %c0_14, %c0_15] : memref<1x2x128xf32, #tpu.memory_space<vmem>>, vector<1x2x128xf32>
      %16 = vector.shape_cast %15 : vector<1x2x128xf32> to vector<2x128xf32>
      %17 = vector.shape_cast %14 : vector<2x128xf32> to vector<1x2x128xf32>
      tpu.vector_store %arg4[%c0_13, %c0_14, %c0_15], %17 {strides = array<i32>} : memref<1x2x128xf32, #tpu.memory_space<vmem>>, vector<1x2x128xf32>,
    } else {
    }
    %c0 = arith.constant 0 : index
    %c0_1 = arith.constant 0 : index
    %c0_2 = arith.constant 0 : index
    %3 = vector.load %arg2[%c0, %c0_1, %c0_2] : memref<2x8x128xf32, #tpu.memory_space<vmem>>, vector<2x8x128xf32>
    %c0_3 = arith.constant 0 : index
    %c0_4 = arith.constant 0 : index
    %c0_5 = arith.constant 0 : index
    %4 = vector.load %arg3[%c0_3, %c0_4, %c0_5] : memref<2x8x128xf32, #tpu.memory_space<vmem>>, vector<2x8x128xf32>
    %5 = arith.addf %3, %4 : vector<2x8x128xf32>
    %6 = math.absf %5 : vector<2x8x128xf32>
    %c0_6 = arith.constant 0 : index
    %c0_7 = arith.constant 0 : index
    %c0_8 = arith.constant 0 : index
    %7 = vector.load %arg4[%c0_6, %c0_7, %c0_8] : memref<1x2x128xf32, #tpu.memory_space<vmem>>, vector<1x2x128xf32>
    %8 = vector.shape_cast %7 : vector<1x2x128xf32> to vector<2x128xf32>
    %cst = arith.constant dense<0.000000e+00> : vector<2x128xf32>
    %9 = vector.multi_reduction <add>, %6, %cst [1] : vector<2x8x128xf32> to vector<2x128xf32>
    %10 = arith.addf %8, %9 : vector<2x128xf32>
    %c0_9 = arith.constant 0 : index
    %c0_10 = arith.constant 0 : index
    %c0_11 = arith.constant 0 : index
    %11 = vector.load %arg4[%c0_9, %c0_10, %c0_11] : memref<1x2x128xf32, #tpu.memory_space<vmem>>, vector<1x2x128xf32>
    %12 = vector.shape_cast %11 : vector<1x2x128xf32> to vector<2x128xf32>
    %13 = vector.shape_cast %10 : vector<2x128xf32> to vector<1x2x128xf32>
    tpu.vector_store %arg4[%c0_9, %c0_10, %c0_11], %13 {strides = array<i32>} : memref<1x2x128xf32, #tpu.memory_space<vmem>>, vector<1x2x128xf32>,
    return
  }
  func.func @transform_0(%arg0: i32, %arg1: i32) -> (i32, i32, i32) {
    %c1_i32 = arith.constant 1 : i32
    %0 = arith.muli %arg0, %c1_i32 : i32
    %1 = arith.addi %0, %arg1 : i32
    %c0_i32 = arith.constant 0 : i32
    %c0_i32_0 = arith.constant 0 : i32
    %c0_i32_1 = arith.constant 0 : i32
    return %c0_i32, %1, %c0_i32_0 : i32, i32, i32
  }
  func.func @transform_1(%arg0: i32, %arg1: i32) -> (i32, i32, i32) {
    %c1_i32 = arith.constant 1 : i32
    %0 = arith.muli %arg0, %c1_i32 : i32
    %1 = arith.addi %0, %arg1 : i32
    %c0_i32 = arith.constant 0 : i32
    %c0_i32_0 = arith.constant 0 : i32
    %c0_i32_1 = arith.constant 0 : i32
    return %c0_i32, %1, %c0_i32_0 : i32, i32, i32
  }
  func.func @transform_2(%arg0: i32, %arg1: i32) -> (i32, i32, i32) {
    %c0_i32 = arith.constant 0 : i32
    %c0_i32_0 = arith.constant 0 : i32
    %c0_i32_1 = arith.constant 0 : i32
    return %arg0, %c0_i32, %c0_i32_0 : i32, i32, i32
  }
}

module attributes {stable_mosaic.version = 11 : i64} {
  func.func @_dsm_abs_sum_kernel(%arg0: i32, %arg1: i32, %arg2: memref<2x2x128xf32, #tpu.memory_space<vmem>>, %arg3: memref<2x2x128xf32, #tpu.memory_space<vmem>>, %arg4: memref<1x2x128xf32, #tpu.memory_space<vmem>>) attributes {dimension_semantics = [#tpu.dimension_semantics<parallel>, #tpu.dimension_semantics<arbitrary>], iteration_bounds = array<i64: 1, 1>, scalar_prefetch = 0 : i64, scratch_operands = 0 : i64, tpu.core_type = #tpu.core_type<tc>, window_params = [{transform_indices = @transform_0, window_bounds = array<i64: 2, 2, 128>}, {transform_indices = @transform_1, window_bounds = array<i64: 2, 2, 128>}, {transform_indices = @transform_2, window_bounds = array<i64: 1, 2, 128>}]} {
    %c0_i32 = arith.constant 0 : i32
    %0 = arith.cmpi eq, %arg1, %c0_i32 : i32
    %1 = arith.extui %0 : i1 to i32
    %c0_i32_0 = arith.constant 0 : i32
    %2 = arith.cmpi ne, %1, %c0_i32_0 : i32
    scf.if %2 {
      %cst_12 = arith.constant 0.000000e+00 : f32
      %14 = vector.broadcast %cst_12 : f32 to vector<2x128xf32>
      %c0_13 = arith.constant 0 : index
      %c0_14 = arith.constant 0 : index
      %c0_15 = arith.constant 0 : index
      %15 = vector.load %arg4[%c0_13, %c0_14, %c0_15] : memref<1x2x128xf32, #tpu.memory_space<vmem>>, vector<1x2x128xf32>
      %16 = vector.shape_cast %15 : vector<1x2x128xf32> to vector<2x128xf32>
      %17 = vector.shape_cast %14 : vector<2x128xf32> to vector<1x2x128xf32>
      tpu.vector_store %arg4[%c0_13, %c0_14, %c0_15], %17 {strides = array<i32>} : memref<1x2x128xf32, #tpu.memory_space<vmem>>, vector<1x2x128xf32>,
    } else {
    }
    %c0 = arith.constant 0 : index
    %c0_1 = arith.constant 0 : index
    %c0_2 = arith.constant 0 : index
    %3 = vector.load %arg2[%c0, %c0_1, %c0_2] : memref<2x2x128xf32, #tpu.memory_space<vmem>>, vector<2x2x128xf32>
    %c0_3 = arith.constant 0 : index
    %c0_4 = arith.constant 0 : index
    %c0_5 = arith.constant 0 : index
    %4 = vector.load %arg3[%c0_3, %c0_4, %c0_5] : memref<2x2x128xf32, #tpu.memory_space<vmem>>, vector<2x2x128xf32>
    %5 = arith.addf %3, %4 : vector<2x2x128xf32>
    %6 = math.absf %5 : vector<2x2x128xf32>
    %c0_6 = arith.constant 0 : index
    %c0_7 = arith.constant 0 : index
    %c0_8 = arith.constant 0 : index
    %7 = vector.load %arg4[%c0_6, %c0_7, %c0_8] : memref<1x2x128xf32, #tpu.memory_space<vmem>>, vector<1x2x128xf32>
    %8 = vector.shape_cast %7 : vector<1x2x128xf32> to vector<2x128xf32>
    %cst = arith.constant dense<0.000000e+00> : vector<2x128xf32>
    %9 = vector.multi_reduction <add>, %6, %cst [1] : vector<2x2x128xf32> to vector<2x128xf32>
    %10 = arith.addf %8, %9 : vector<2x128xf32>
    %c0_9 = arith.constant 0 : index
    %c0_10 = arith.constant 0 : index
    %c0_11 = arith.constant 0 : index
    %11 = vector.load %arg4[%c0_9, %c0_10, %c0_11] : memref<1x2x128xf32, #tpu.memory_space<vmem>>, vector<1x2x128xf32>
    %12 = vector.shape_cast %11 : vector<1x2x128xf32> to vector<2x128xf32>
    %13 = vector.shape_cast %10 : vector<2x128xf32> to vector<1x2x128xf32>
    tpu.vector_store %arg4[%c0_9, %c0_10, %c0_11], %13 {strides = array<i32>} : memref<1x2x128xf32, #tpu.memory_space<vmem>>, vector<1x2x128xf32>,
    return
  }
  func.func @transform_0(%arg0: i32, %arg1: i32) -> (i32, i32, i32) {
    %c1_i32 = arith.constant 1 : i32
    %0 = arith.muli %arg0, %c1_i32 : i32
    %1 = arith.addi %0, %arg1 : i32
    %c0_i32 = arith.constant 0 : i32
    %c0_i32_0 = arith.constant 0 : i32
    %c0_i32_1 = arith.constant 0 : i32
    return %c0_i32, %1, %c0_i32_0 : i32, i32, i32
  }
  func.func @transform_1(%arg0: i32, %arg1: i32) -> (i32, i32, i32) {
    %c1_i32 = arith.constant 1 : i32
    %0 = arith.muli %arg0, %c1_i32 : i32
    %1 = arith.addi %0, %arg1 : i32
    %c0_i32 = arith.constant 0 : i32
    %c0_i32_0 = arith.constant 0 : i32
    %c0_i32_1 = arith.constant 0 : i32
    return %c0_i32, %1, %c0_i32_0 : i32, i32, i32
  }
  func.func @transform_2(%arg0: i32, %arg1: i32) -> (i32, i32, i32) {
    %c0_i32 = arith.constant 0 : i32
    %c0_i32_0 = arith.constant 0 : i32
    %c0_i32_1 = arith.constant 0 : i32
    return %arg0, %c0_i32, %c0_i32_0 : i32, i32, i32
  }
}

</mosaic_0001>

<llo_original>
// kernel: _dsm_loss_core.2
$region0: #{_dsm_loss_core.2}
  #allocation0 [shape = 'u32[]', space=smem, size = 0x4, offset = 0x4, fixed_abs, tag = 'smem constant byte address 0x4 - core index']
  #allocation1 [shape = 'u32[72,128]{1,0:T(1,128)}', space=vmem, size = 0x9000, scoped, tag = 'internal scratch']
  %s0 = inlined_call_operand.vmem [shape: f32[2,8,128], index: 0, kind: input, shape index: {}]
  %s1 = inlined_call_operand.vmem [shape: f32[2,8,128], index: 1, kind: input, shape index: {}]
  %s2 = inlined_call_operand.vmem [shape: f32[1,2,128], index: 2, kind: output, shape index: {}]
  %s3 = sld [smem:[#allocation0]]
  $region22: #{_dsm_loss_core.2} parent=0
    _
  %s5 = ssub.s32 1, %s3
  %s6 = scalar_select 0, %s5, %s3
  // Predicated region
  $region2: #{_dsm_loss_core.2} parent=0 // pred_check
    _
  $region3: #{_dsm_loss_core.2} parent=0 // pred_check_branch
    %8 = sbr.rel (0) target = $region5
  $region4: #{_dsm_loss_core.2} parent=0 // pred_region
    %s9 = sadd.s32 0, 0
    %p10 = scmp.lt.s32.totalorder %s9, 0
    %s11 = scalar_select %p10, %s9, 0
    %s12 = smul.addr %s11, 8
    %s13 = scalar_lea.vmem %s0, %s12
    %s14 = sadd.s32 0, 0
  $region5: #{_dsm_loss_core.2} parent=0 // pred_fallthru
    _
  // Predicated region
  $region6: #{_dsm_loss_core.2} parent=0 // pred_check
    _
  $region7: #{_dsm_loss_core.2} parent=0 // pred_check_branch
    %16 = sbr.rel (0) target = $region9
  $region8: #{_dsm_loss_core.2} parent=0 // pred_region
    %s17 = sadd.s32 0, 0
    %p18 = scmp.lt.s32.totalorder %s17, 0
    %s19 = scalar_select %p18, %s17, 0
    %s20 = smul.addr %s19, 8
    %s21 = scalar_lea.vmem %s1, %s20
    %s22 = sadd.s32 0, 0
  $region9: #{_dsm_loss_core.2} parent=0 // pred_fallthru
    _
  %s23 = sadd.s32 0, 0
  %p24 = scmp.lt.s32.totalorder %s23, 0
  %s25 = scalar_select %p24, %s23, 0
  %s26 = smul.addr %s25, 8
  %s27 = scalar_lea.vmem %s0, %s26
  %s28 = sadd.s32 0, 0
  %p29 = scmp.lt.s32.totalorder %s28, 0
  %s30 = scalar_select %p29, %s28, 0
  %s31 = smul.addr %s30, 8
  %s32 = scalar_lea.vmem %s1, %s31
  %s33 = sadd.s32 0, 0
  %p34 = scmp.lt.s32.totalorder %s33, 0
  %s35 = scalar_select %p34, %s33, 0
  %s36 = smul.addr %s35, 8
  %s37 = scalar_lea.vmem %s0, %s36
  %s38 = sadd.s32 0, 0
  %s39 = sadd.s32 0, 0
  %p40 = scmp.lt.s32.totalorder %s39, 0
  %s41 = scalar_select %p40, %s39, 0
  %s42 = smul.addr %s41, 8
  %s43 = scalar_lea.vmem %s1, %s42
  %s44 = sadd.s32 0, 0
  %p45 = scmp.eq.s32.totalorder 0, 0
  // Predicated region
  $region10: #{_dsm_loss_core.2} parent=0 // pred_check
    %p46 = pneg %p45
  $region11: #{_dsm_loss_core.2} parent=0 // pred_check_branch
    %48 = sbr.rel (%p46) target = $region13
  $region12: #{_dsm_loss_core.2} parent=0 // pred_region
    %49 = vst [vmem:[%s2] sm:$0x3] 0.0
  $region13: #{_dsm_loss_core.2} parent=0 // pred_fallthru
    _
  %v50 = vld [vmem:[%s37] sm:$0xff]
  %v51 = vld [vmem:[%s37 + $0x8] sm:$0xff]
  %v52 = vld [vmem:[%s43] sm:$0xff]
  %v53 = vld [vmem:[%s43 + $0x8] sm:$0xff]
  %v54 = vadd.f32 %v50, %v52
  %v55 = vadd.f32 %v51, %v53
  %v56 = vand.u32 2147483647, %v54
  %v57 = vand.u32 2147483647, %v55
  %v58 = vld [vmem:[%s2] sm:$0x3]
  %v59 = vrot.slane %v56, 4
  %v60 = vadd.f32 %v56, %v59
  %v61 = vrot.slane %v60, 2
  %v62 = vadd.f32 %v60, %v61
  %v63 = vrot.slane %v62, 1
  %v64 = vadd.f32 %v62, %v63
  %v65 = vrot.slane %v57, 4
  %v66 = vadd.f32 %v57, %v65
  %v67 = vrot.slane %v66, 2
  %v68 = vadd.f32 %v66, %v67
  %v69 = vrot.slane %v68, 1
  %v70 = vadd.f32 %v68, %v69
  %vm73 = vcmask 1041409
  %v74 = vsel %vm73, %v70, %v64
  %v76 = vadd.f32 %v58, %v74
  %77 = vst [vmem:[%s2] sm:$0x3] %v76
  // Predicated region
  $region14: #{_dsm_loss_core.2} parent=0 // pred_check
    _
  $region15: #{_dsm_loss_core.2} parent=0 // pred_check_branch
    %79 = sbr.rel (0) target = $region17
  $region16: #{_dsm_loss_core.2} parent=0 // pred_region
    _
  $region17: #{_dsm_loss_core.2} parent=0 // pred_fallthru
    _
  // Predicated region
  $region18: #{_dsm_loss_core.2} parent=0 // pred_check
    _
  $region19: #{_dsm_loss_core.2} parent=0 // pred_check_branch
    %81 = sbr.rel (0) target = $region21
  $region20: #{_dsm_loss_core.2} parent=0 // pred_region
    _
  $region21: #{_dsm_loss_core.2} parent=0 // pred_fallthru
    _

// kernel: _dsm_loss_core.3
$region0: #{_dsm_loss_core.3}
  #allocation0 [shape = 'u32[]', space=smem, size = 0x4, offset = 0x4, fixed_abs, tag = 'smem constant byte address 0x4 - core index']
  #allocation1 [shape = 'u32[72,128]{1,0:T(1,128)}', space=vmem, size = 0x9000, scoped, tag = 'internal scratch']
  %s0 = inlined_call_operand.vmem [shape: f32[2,2,128], index: 0, kind: input, shape index: {}]
  %s1 = inlined_call_operand.vmem [shape: f32[2,2,128], index: 1, kind: input, shape index: {}]
  %s2 = inlined_call_operand.vmem [shape: f32[1,2,128], index: 2, kind: output, shape index: {}]
  %s3 = sld [smem:[#allocation0]]
  $region22: #{_dsm_loss_core.3} parent=0
    _
  %s5 = ssub.s32 1, %s3
  %s6 = scalar_select 0, %s5, %s3
  // Predicated region
  $region2: #{_dsm_loss_core.3} parent=0 // pred_check
    _
  $region3: #{_dsm_loss_core.3} parent=0 // pred_check_branch
    %8 = sbr.rel (0) target = $region5
  $region4: #{_dsm_loss_core.3} parent=0 // pred_region
    %s9 = sadd.s32 0, 0
    %p10 = scmp.lt.s32.totalorder %s9, 0
    %s11 = scalar_select %p10, %s9, 0
    %s12 = smul.addr %s11, 2
    %s13 = scalar_lea.vmem %s0, %s12
    %s14 = sadd.s32 0, 0
  $region5: #{_dsm_loss_core.3} parent=0 // pred_fallthru
    _
  // Predicated region
  $region6: #{_dsm_loss_core.3} parent=0 // pred_check
    _
  $region7: #{_dsm_loss_core.3} parent=0 // pred_check_branch
    %16 = sbr.rel (0) target = $region9
  $region8: #{_dsm_loss_core.3} parent=0 // pred_region
    %s17 = sadd.s32 0, 0
    %p18 = scmp.lt.s32.totalorder %s17, 0
    %s19 = scalar_select %p18, %s17, 0
    %s20 = smul.addr %s19, 2
    %s21 = scalar_lea.vmem %s1, %s20
    %s22 = sadd.s32 0, 0
  $region9: #{_dsm_loss_core.3} parent=0 // pred_fallthru
    _
  %s23 = sadd.s32 0, 0
  %p24 = scmp.lt.s32.totalorder %s23, 0
  %s25 = scalar_select %p24, %s23, 0
  %s26 = smul.addr %s25, 2
  %s27 = scalar_lea.vmem %s0, %s26
  %s28 = sadd.s32 0, 0
  %p29 = scmp.lt.s32.totalorder %s28, 0
  %s30 = scalar_select %p29, %s28, 0
  %s31 = smul.addr %s30, 2
  %s32 = scalar_lea.vmem %s1, %s31
  %s33 = sadd.s32 0, 0
  %p34 = scmp.lt.s32.totalorder %s33, 0
  %s35 = scalar_select %p34, %s33, 0
  %s36 = smul.addr %s35, 2
  %s37 = scalar_lea.vmem %s0, %s36
  %s38 = sadd.s32 0, 0
  %s39 = sadd.s32 0, 0
  %p40 = scmp.lt.s32.totalorder %s39, 0
  %s41 = scalar_select %p40, %s39, 0
  %s42 = smul.addr %s41, 2
  %s43 = scalar_lea.vmem %s1, %s42
  %s44 = sadd.s32 0, 0
  %p45 = scmp.eq.s32.totalorder 0, 0
  // Predicated region
  $region10: #{_dsm_loss_core.3} parent=0 // pred_check
    %p46 = pneg %p45
  $region11: #{_dsm_loss_core.3} parent=0 // pred_check_branch
    %48 = sbr.rel (%p46) target = $region13
  $region12: #{_dsm_loss_core.3} parent=0 // pred_region
    %49 = vst [vmem:[%s2] sm:$0x3] 0.0
  $region13: #{_dsm_loss_core.3} parent=0 // pred_fallthru
    _
  %v50 = vld [vmem:[%s37] sm:$0x3]
  %v51 = vld [vmem:[%s37 + $0x2] sm:$0x3]
  %v52 = vld [vmem:[%s43] sm:$0x3]
  %v53 = vld [vmem:[%s43 + $0x2] sm:$0x3]
  %v54 = vadd.f32 %v50, %v52
  %v55 = vadd.f32 %v51, %v53
  %v56 = vand.u32 2147483647, %v54
  %v57 = vand.u32 2147483647, %v55
  %v58 = vld [vmem:[%s2] sm:$0x3]
  %vm59 = vcmask 1041408
  %v60 = vsel %vm59, %v56, 0.0
  %v61 = vrot.slane %v60, 4
  %v62 = vadd.f32 %v60, %v61
  %v63 = vrot.slane %v62, 2
  %v64 = vadd.f32 %v62, %v63
  %v65 = vrot.slane %v64, 1
  %v66 = vadd.f32 %v64, %v65
  %v67 = vsel %vm59, %v57, 0.0
  %v68 = vrot.slane %v67, 4
  %v69 = vadd.f32 %v67, %v68
  %v70 = vrot.slane %v69, 2
  %v71 = vadd.f32 %v69, %v70
  %v72 = vrot.slane %v71, 1
  %v73 = vadd.f32 %v71, %v72
  %vm76 = vcmask 1041409
  %v77 = vsel %vm76, %v73, %v66
  %v79 = vadd.f32 %v58, %v77
  %80 = vst [vmem:[%s2] sm:$0x3] %v79
  // Predicated region
  $region14: #{_dsm_loss_core.3} parent=0 // pred_check
    _
  $region15: #{_dsm_loss_core.3} parent=0 // pred_check_branch
    %82 = sbr.rel (0) target = $region17
  $region16: #{_dsm_loss_core.3} parent=0 // pred_region
    _
  $region17: #{_dsm_loss_core.3} parent=0 // pred_fallthru
    _
  // Predicated region
  $region18: #{_dsm_loss_core.3} parent=0 // pred_check
    _
  $region19: #{_dsm_loss_core.3} parent=0 // pred_check_branch
    %84 = sbr.rel (0) target = $region21
  $region20: #{_dsm_loss_core.3} parent=0 // pred_region
    _
  $region21: #{_dsm_loss_core.3} parent=0 // pred_fallthru
    _

</llo_original>
